<compile_context>
chip_gen: v6e
topology: v6e:2x2x1
jax: 0.10.0
libtpu: 0.0.40
codegen_flags: <defaults>
</compile_context>

<pallas_src>
import jax
import jax.numpy as jnp
from jax.experimental import pallas as pl
from jax.experimental.pallas import tpu as pltpu


C_IN = 3
C_HID = 16
C_OUT = 1
LANES = 128


def guide_nn_kernel(x_ref, w1_ref, b1_ref, w2_ref, b2_ref, o_ref):
    # x_ref : (C_IN, TR, 128) VMEM  -- channel-planar pixel tile
    # w1_ref: (C_IN, C_HID)   SMEM    b1_ref: (C_HID,) SMEM
    # w2_ref: (C_HID,)        SMEM    b2_ref: (1,)     SMEM
    # o_ref : (TR, 128)       VMEM  -- lane-dense output tile
    x0 = x_ref[0]
    x1 = x_ref[1]
    x2 = x_ref[2]
    acc = jnp.zeros_like(x0)
    for j in range(C_HID):
        h = (x0 * w1_ref[0, j]
             + x1 * w1_ref[1, j]
             + x2 * w1_ref[2, j]
             + b1_ref[j])
        h = jnp.maximum(h, 0.0)            # ReLU (conv1 activation) on the VPU
        acc = acc + h * w2_ref[j]          # conv2 accumulation (VPU FMA)
    # Tanh on the full lane-dense tile goes to the EUP (own bundle slot).
    o_ref[...] = jnp.tanh(acc + b2_ref[0])


def _pick_tile_rows(rows, max_tile_rows):
    """Largest tile that divides `rows`; full-extent if it fits, else a
    multiple of 8 (sublane constraint) dividing rows."""
    if rows <= max_tile_rows:
        return rows
    for t in range(max_tile_rows, 7, -1):
        if rows % t == 0 and t % 8 == 0:
            return t
    # TODO(synk): ragged row counts with no suitable divisor fall back to a
    # single tile per image; handle with an in-kernel masked tail if needed.
    return rows


def guide_nn_pallas(x_nchw, w1, b1, w2, b2, *, max_tile_rows=1024):
    """x_nchw: [N, 3, H, W] float32.  Returns [N, 1, H, W] float32.

    w1: [3, 16], b1: [16], w2: [16], b2: [1]  (matmul-ready 1x1-conv weights).
    """
    N, C, H, W = x_nchw.shape
    assert C == C_IN
    HW = H * W

    # Lane-pad the per-image pixel axis only if H*W is not a multiple of 128.
    pad = (-HW) % LANES
    x_planes = x_nchw.reshape(N, C_IN, HW)
    if pad:
        # TODO(synk): this pad materializes an extra HBM copy; only hit when
        # H*W % 128 != 0 — handle the ragged tail in-kernel if that case
        # matters for production shapes.
        x_planes = jnp.pad(x_planes, ((0, 0), (0, 0), (0, pad)))
    HWp = HW + pad
    rows = HWp // LANES
    x_planes = x_planes.reshape(N, C_IN, rows, LANES)

    tr = _pick_tile_rows(rows, max_tile_rows)
    grid = (N, rows // tr)

    out = pl.pallas_call(
        guide_nn_kernel,
        out_shape=jax.ShapeDtypeStruct((N, rows, LANES), jnp.float32),
        grid_spec=pltpu.PrefetchScalarGridSpec(
            num_scalar_prefetch=0,
            grid=grid,
            in_specs=[
                # Channel-planar pixel tile: (C_IN, tr, 128); batch dim squeezed.
                pl.BlockSpec((None, C_IN, tr, LANES), lambda n, t: (n, 0, t, 0)),
                # Weights/biases: SMEM residents, read as scalars in-kernel.
                pl.BlockSpec(memory_space=pltpu.MemorySpace.SMEM),  # w1 (3,16)
                pl.BlockSpec(memory_space=pltpu.MemorySpace.SMEM),  # b1 (16,)
                pl.BlockSpec(memory_space=pltpu.MemorySpace.SMEM),  # w2 (16,)
                pl.BlockSpec(memory_space=pltpu.MemorySpace.SMEM),  # b2 (1,)
            ],
            out_specs=pl.BlockSpec((None, tr, LANES), lambda n, t: (n, t, 0)),
        ),
        compiler_params=pltpu.CompilerParams(
            dimension_semantics=("parallel", "parallel")),
    )(x_planes, w1, b1, w2, b2)

    # [N, rows, 128] -> [N, HWp] -> drop lane pad -> [N, 1, H, W] (pure reshape)
    return out.reshape(N, HWp)[:, :HW].reshape(N, C_OUT, H, W)


def make_params(key):
    """Deterministic synthetic weights matching the PyTorch module shapes.

    conv1: Conv2d(3, 16, k=1)  -> weight [16,3,1,1], bias [16]
    conv2: Conv2d(16, 1, k=1)  -> weight [1,16,1,1], bias [1]
    Stored matmul-ready: W1 [3,16], b1 [16], W2 [16], b2 [1].
    """
    k1, k2, k3, k4 = jax.random.split(key, 4)
    w1 = jax.random.normal(k1, (C_IN, C_HID), jnp.float32) * 0.3
    b1 = jax.random.normal(k2, (C_HID,), jnp.float32) * 0.1
    w2 = jax.random.normal(k3, (C_HID,), jnp.float32) * 0.3
    b2 = jax.random.normal(k4, (C_OUT,), jnp.float32) * 0.1
    return w1, b1, w2, b2


def guide_nn_reference(x_nchw, w1, b1, w2, b2):
    """Pure-JAX reference (identical math) for sanity checking."""
    N, _, H, W = x_nchw.shape
    x_rows = jnp.transpose(x_nchw, (0, 2, 3, 1)).reshape(-1, C_IN)
    h = jnp.maximum(x_rows @ w1 + b1[None, :], 0.0)
    y = jnp.tanh(h @ w2[:, None] + b2[None, :])
    return jnp.transpose(y.reshape(N, H, W, C_OUT), (0, 3, 1, 2))


if __name__ == "__main__":
    key = jax.random.PRNGKey(0)
    kx, kp = jax.random.split(key)

    # Small shapes consistent with the module: NCHW, 3 input channels.
    x = jax.random.normal(kx, (2, 3, 16, 16), jnp.float32)
    w1, b1, w2, b2 = make_params(kp)

    out = guide_nn_pallas(x, w1, b1, w2, b2)
    out = jax.block_until_ready(out)

    ref = guide_nn_reference(x, w1, b1, w2, b2)
    assert out.shape == (2, 1, 16, 16), out.shape
    assert jnp.allclose(out, ref, atol=1e-5, rtol=1e-5), "mismatch vs reference"

    print("KERNEL_OK")
</pallas_src>

<mosaic_0001>
module attributes {stable_mosaic.version = 11 : i64} {
  func.func @guide_nn_kernel(%arg0: i32, %arg1: i32, %arg2: memref<1x3x2x128xf32, #tpu.memory_space<vmem>>, %arg3: memref<3x16xf32, #tpu.memory_space<smem>>, %arg4: memref<16xf32, #tpu.memory_space<smem>>, %arg5: memref<16xf32, #tpu.memory_space<smem>>, %arg6: memref<1xf32, #tpu.memory_space<smem>>, %arg7: memref<1x2x128xf32, #tpu.memory_space<vmem>>) attributes {dimension_semantics = [#tpu.dimension_semantics<parallel>, #tpu.dimension_semantics<parallel>], iteration_bounds = array<i64: 2, 1>, scalar_prefetch = 0 : i64, scratch_operands = 0 : i64, tpu.core_type = #tpu.core_type<tc>, window_params = [{transform_indices = @transform_0, window_bounds = array<i64: 1, 3, 2, 128>}, {transform_indices = @transform_1, window_bounds = array<i64: 3, 16>}, {transform_indices = @transform_2, window_bounds = array<i64: 16>}, {transform_indices = @transform_3, window_bounds = array<i64: 16>}, {transform_indices = @transform_4, window_bounds = array<i64: 1>}, {transform_indices = @transform_5, window_bounds = array<i64: 1, 2, 128>}]} {
    %c0 = arith.constant 0 : index
    %c0_0 = arith.constant 0 : index
    %c0_1 = arith.constant 0 : index
    %c0_2 = arith.constant 0 : index
    %0 = vector.load %arg2[%c0, %c0_0, %c0_1, %c0_2] : memref<1x3x2x128xf32, #tpu.memory_space<vmem>>, vector<1x1x2x128xf32>
    %1 = vector.shape_cast %0 : vector<1x1x2x128xf32> to vector<2x128xf32>
    %c0_3 = arith.constant 0 : index
    %c1 = arith.constant 1 : index
    %c0_4 = arith.constant 0 : index
    %c0_5 = arith.constant 0 : index
    %2 = vector.load %arg2[%c0_3, %c1, %c0_4, %c0_5] : memref<1x3x2x128xf32, #tpu.memory_space<vmem>>, vector<1x1x2x128xf32>
    %3 = vector.shape_cast %2 : vector<1x1x2x128xf32> to vector<2x128xf32>
    %c0_6 = arith.constant 0 : index
    %c2 = arith.constant 2 : index
    %c0_7 = arith.constant 0 : index
    %c0_8 = arith.constant 0 : index
    %4 = vector.load %arg2[%c0_6, %c2, %c0_7, %c0_8] : memref<1x3x2x128xf32, #tpu.memory_space<vmem>>, vector<1x1x2x128xf32>
    %5 = vector.shape_cast %4 : vector<1x1x2x128xf32> to vector<2x128xf32>
    %cst = arith.constant 0.000000e+00 : f32
    %6 = vector.broadcast %cst : f32 to vector<2x128xf32>
    %c0_9 = arith.constant 0 : index
    %c0_10 = arith.constant 0 : index
    %7 = memref.load %arg3[%c0_9, %c0_10] : memref<3x16xf32, #tpu.memory_space<smem>>
    %8 = vector.broadcast %7 : f32 to vector<2x128xf32>
    %9 = arith.mulf %1, %8 : vector<2x128xf32>
    %c1_11 = arith.constant 1 : index
    %c0_12 = arith.constant 0 : index
    %10 = memref.load %arg3[%c1_11, %c0_12] : memref<3x16xf32, #tpu.memory_space<smem>>
    %11 = vector.broadcast %10 : f32 to vector<2x128xf32>
    %12 = arith.mulf %3, %11 : vector<2x128xf32>
    %13 = arith.addf %9, %12 : vector<2x128xf32>
    %c2_13 = arith.constant 2 : index
    %c0_14 = arith.constant 0 : index
    %14 = memref.load %arg3[%c2_13, %c0_14] : memref<3x16xf32, #tpu.memory_space<smem>>
    %15 = vector.broadcast %14 : f32 to vector<2x128xf32>
    %16 = arith.mulf %5, %15 : vector<2x128xf32>
    %17 = arith.addf %13, %16 : vector<2x128xf32>
    %c0_15 = arith.constant 0 : index
    %18 = memref.load %arg4[%c0_15] : memref<16xf32, #tpu.memory_space<smem>>
    %19 = vector.broadcast %18 : f32 to vector<2x128xf32>
    %20 = arith.addf %17, %19 : vector<2x128xf32>
    %cst_16 = arith.constant 0.000000e+00 : f32
    %21 = vector.broadcast %cst_16 : f32 to vector<2x128xf32>
    %22 = arith.maximumf %20, %21 : vector<2x128xf32>
    %c0_17 = arith.constant 0 : index
    %23 = memref.load %arg5[%c0_17] : memref<16xf32, #tpu.memory_space<smem>>
    %24 = vector.broadcast %23 : f32 to vector<2x128xf32>
    %25 = arith.mulf %22, %24 : vector<2x128xf32>
    %26 = arith.addf %6, %25 : vector<2x128xf32>
    %c0_18 = arith.constant 0 : index
    %c1_19 = arith.constant 1 : index
    %27 = memref.load %arg3[%c0_18, %c1_19] : memref<3x16xf32, #tpu.memory_space<smem>>
    %28 = vector.broadcast %27 : f32 to vector<2x128xf32>
    %29 = arith.mulf %1, %28 : vector<2x128xf32>
    %c1_20 = arith.constant 1 : index
    %c1_21 = arith.constant 1 : index
    %30 = memref.load %arg3[%c1_20, %c1_21] : memref<3x16xf32, #tpu.memory_space<smem>>
    %31 = vector.broadcast %30 : f32 to vector<2x128xf32>
    %32 = arith.mulf %3, %31 : vector<2x128xf32>
    %33 = arith.addf %29, %32 : vector<2x128xf32>
    %c2_22 = arith.constant 2 : index
    %c1_23 = arith.constant 1 : index
    %34 = memref.load %arg3[%c2_22, %c1_23] : memref<3x16xf32, #tpu.memory_space<smem>>
    %35 = vector.broadcast %34 : f32 to vector<2x128xf32>
    %36 = arith.mulf %5, %35 : vector<2x128xf32>
    %37 = arith.addf %33, %36 : vector<2x128xf32>
    %c1_24 = arith.constant 1 : index
    %38 = memref.load %arg4[%c1_24] : memref<16xf32, #tpu.memory_space<smem>>
    %39 = vector.broadcast %38 : f32 to vector<2x128xf32>
    %40 = arith.addf %37, %39 : vector<2x128xf32>
    %cst_25 = arith.constant 0.000000e+00 : f32
    %41 = vector.broadcast %cst_25 : f32 to vector<2x128xf32>
    %42 = arith.maximumf %40, %41 : vector<2x128xf32>
    %c1_26 = arith.constant 1 : index
    %43 = memref.load %arg5[%c1_26] : memref<16xf32, #tpu.memory_space<smem>>
    %44 = vector.broadcast %43 : f32 to vector<2x128xf32>
    %45 = arith.mulf %42, %44 : vector<2x128xf32>
    %46 = arith.addf %26, %45 : vector<2x128xf32>
    %c0_27 = arith.constant 0 : index
    %c2_28 = arith.constant 2 : index
    %47 = memref.load %arg3[%c0_27, %c2_28] : memref<3x16xf32, #tpu.memory_space<smem>>
    %48 = vector.broadcast %47 : f32 to vector<2x128xf32>
    %49 = arith.mulf %1, %48 : vector<2x128xf32>
    %c1_29 = arith.constant 1 : index
    %c2_30 = arith.constant 2 : index
    %50 = memref.load %arg3[%c1_29, %c2_30] : memref<3x16xf32, #tpu.memory_space<smem>>
    %51 = vector.broadcast %50 : f32 to vector<2x128xf32>
    %52 = arith.mulf %3, %51 : vector<2x128xf32>
    %53 = arith.addf %49, %52 : vector<2x128xf32>
    %c2_31 = arith.constant 2 : index
    %c2_32 = arith.constant 2 : index
    %54 = memref.load %arg3[%c2_31, %c2_32] : memref<3x16xf32, #tpu.memory_space<smem>>
    %55 = vector.broadcast %54 : f32 to vector<2x128xf32>
    %56 = arith.mulf %5, %55 : vector<2x128xf32>
    %57 = arith.addf %53, %56 : vector<2x128xf32>
    %c2_33 = arith.constant 2 : index
    %58 = memref.load %arg4[%c2_33] : memref<16xf32, #tpu.memory_space<smem>>
    %59 = vector.broadcast %58 : f32 to vector<2x128xf32>
    %60 = arith.addf %57, %59 : vector<2x128xf32>
    %cst_34 = arith.constant 0.000000e+00 : f32
    %61 = vector.broadcast %cst_34 : f32 to vector<2x128xf32>
    %62 = arith.maximumf %60, %61 : vector<2x128xf32>
    %c2_35 = arith.constant 2 : index
    %63 = memref.load %arg5[%c2_35] : memref<16xf32, #tpu.memory_space<smem>>
    %64 = vector.broadcast %63 : f32 to vector<2x128xf32>
    %65 = arith.mulf %62, %64 : vector<2x128xf32>
    %66 = arith.addf %46, %65 : vector<2x128xf32>
    %c0_36 = arith.constant 0 : index
    %c3 = arith.constant 3 : index
    %67 = memref.load %arg3[%c0_36, %c3] : memref<3x16xf32, #tpu.memory_space<smem>>
    %68 = vector.broadcast %67 : f32 to vector<2x128xf32>
    %69 = arith.mulf %1, %68 : vector<2x128xf32>
    %c1_37 = arith.constant 1 : index
    %c3_38 = arith.constant 3 : index
    %70 = memref.load %arg3[%c1_37, %c3_38] : memref<3x16xf32, #tpu.memory_space<smem>>
    %71 = vector.broadcast %70 : f32 to vector<2x128xf32>
    %72 = arith.mulf %3, %71 : vector<2x128xf32>
    %73 = arith.addf %69, %72 : vector<2x128xf32>
    %c2_39 = arith.constant 2 : index
    %c3_40 = arith.constant 3 : index
    %74 = memref.load %arg3[%c2_39, %c3_40] : memref<3x16xf32, #tpu.memory_space<smem>>
    %75 = vector.broadcast %74 : f32 to vector<2x128xf32>
    %76 = arith.mulf %5, %75 : vector<2x128xf32>
    %77 = arith.addf %73, %76 : vector<2x128xf32>
    %c3_41 = arith.constant 3 : index
    %78 = memref.load %arg4[%c3_41] : memref<16xf32, #tpu.memory_space<smem>>
    %79 = vector.broadcast %78 : f32 to vector<2x128xf32>
    %80 = arith.addf %77, %79 : vector<2x128xf32>
    %cst_42 = arith.constant 0.000000e+00 : f32
    %81 = vector.broadcast %cst_42 : f32 to vector<2x128xf32>
    %82 = arith.maximumf %80, %81 : vector<2x128xf32>
    %c3_43 = arith.constant 3 : index
    %83 = memref.load %arg5[%c3_43] : memref<16xf32, #tpu.memory_space<smem>>
    %84 = vector.broadcast %83 : f32 to vector<2x128xf32>
    %85 = arith.mulf %82, %84 : vector<2x128xf32>
    %86 = arith.addf %66, %85 : vector<2x128xf32>
    %c0_44 = arith.constant 0 : index
    %c4 = arith.constant 4 : index
    %87 = memref.load %arg3[%c0_44, %c4] : memref<3x16xf32, #tpu.memory_space<smem>>
    %88 = vector.broadcast %87 : f32 to vector<2x128xf32>
    %89 = arith.mulf %1, %88 : vector<2x128xf32>
    %c1_45 = arith.constant 1 : index
    %c4_46 = arith.constant 4 : index
    %90 = memref.load %arg3[%c1_45, %c4_46] : memref<3x16xf32, #tpu.memory_space<smem>>
    %91 = vector.broadcast %90 : f32 to vector<2x128xf32>
    %92 = arith.mulf %3, %91 : vector<2x128xf32>
    %93 = arith.addf %89, %92 : vector<2x128xf32>
    %c2_47 = arith.constant 2 : index
    %c4_48 = arith.constant 4 : index
    %94 = memref.load %arg3[%c2_47, %c4_48] : memref<3x16xf32, #tpu.memory_space<smem>>
    %95 = vector.broadcast %94 : f32 to vector<2x128xf32>
    %96 = arith.mulf %5, %95 : vector<2x128xf32>
    %97 = arith.addf %93, %96 : vector<2x128xf32>
    %c4_49 = arith.constant 4 : index
    %98 = memref.load %arg4[%c4_49] : memref<16xf32, #tpu.memory_space<smem>>
    %99 = vector.broadcast %98 : f32 to vector<2x128xf32>
    %100 = arith.addf %97, %99 : vector<2x128xf32>
    %cst_50 = arith.constant 0.000000e+00 : f32
    %101 = vector.broadcast %cst_50 : f32 to vector<2x128xf32>
    %102 = arith.maximumf %100, %101 : vector<2x128xf32>
    %c4_51 = arith.constant 4 : index
    %103 = memref.load %arg5[%c4_51] : memref<16xf32, #tpu.memory_space<smem>>
    %104 = vector.broadcast %103 : f32 to vector<2x128xf32>
    %105 = arith.mulf %102, %104 : vector<2x128xf32>
    %106 = arith.addf %86, %105 : vector<2x128xf32>
    %c0_52 = arith.constant 0 : index
    %c5 = arith.constant 5 : index
    %107 = memref.load %arg3[%c0_52, %c5] : memref<3x16xf32, #tpu.memory_space<smem>>
    %108 = vector.broadcast %107 : f32 to vector<2x128xf32>
    %109 = arith.mulf %1, %108 : vector<2x128xf32>
    %c1_53 = arith.constant 1 : index
    %c5_54 = arith.constant 5 : index
    %110 = memref.load %arg3[%c1_53, %c5_54] : memref<3x16xf32, #tpu.memory_space<smem>>
    %111 = vector.broadcast %110 : f32 to vector<2x128xf32>
    %112 = arith.mulf %3, %111 : vector<2x128xf32>
    %113 = arith.addf %109, %112 : vector<2x128xf32>
    %c2_55 = arith.constant 2 : index
    %c5_56 = arith.constant 5 : index
    %114 = memref.load %arg3[%c2_55, %c5_56] : memref<3x16xf32, #tpu.memory_space<smem>>
    %115 = vector.broadcast %114 : f32 to vector<2x128xf32>
    %116 = arith.mulf %5, %115 : vector<2x128xf32>
    %117 = arith.addf %113, %116 : vector<2x128xf32>
    %c5_57 = arith.constant 5 : index
    %118 = memref.load %arg4[%c5_57] : memref<16xf32, #tpu.memory_space<smem>>
    %119 = vector.broadcast %118 : f32 to vector<2x128xf32>
    %120 = arith.addf %117, %119 : vector<2x128xf32>
    %cst_58 = arith.constant 0.000000e+00 : f32
    %121 = vector.broadcast %cst_58 : f32 to vector<2x128xf32>
    %122 = arith.maximumf %120, %121 : vector<2x128xf32>
    %c5_59 = arith.constant 5 : index
    %123 = memref.load %arg5[%c5_59] : memref<16xf32, #tpu.memory_space<smem>>
    %124 = vector.broadcast %123 : f32 to vector<2x128xf32>
    %125 = arith.mulf %122, %124 : vector<2x128xf32>
    %126 = arith.addf %106, %125 : vector<2x128xf32>
    %c0_60 = arith.constant 0 : index
    %c6 = arith.constant 6 : index
    %127 = memref.load %arg3[%c0_60, %c6] : memref<3x16xf32, #tpu.memory_space<smem>>
    %128 = vector.broadcast %127 : f32 to vector<2x128xf32>
    %129 = arith.mulf %1, %128 : vector<2x128xf32>
    %c1_61 = arith.constant 1 : index
    %c6_62 = arith.constant 6 : index
    %130 = memref.load %arg3[%c1_61, %c6_62] : memref<3x16xf32, #tpu.memory_space<smem>>
    %131 = vector.broadcast %130 : f32 to vector<2x128xf32>
    %132 = arith.mulf %3, %131 : vector<2x128xf32>
    %133 = arith.addf %129, %132 : vector<2x128xf32>
    %c2_63 = arith.constant 2 : index
    %c6_64 = arith.constant 6 : index
    %134 = memref.load %arg3[%c2_63, %c6_64] : memref<3x16xf32, #tpu.memory_space<smem>>
    %135 = vector.broadcast %134 : f32 to vector<2x128xf32>
    %136 = arith.mulf %5, %135 : vector<2x128xf32>
    %137 = arith.addf %133, %136 : vector<2x128xf32>
    %c6_65 = arith.constant 6 : index
    %138 = memref.load %arg4[%c6_65] : memref<16xf32, #tpu.memory_space<smem>>
    %139 = vector.broadcast %138 : f32 to vector<2x128xf32>
    %140 = arith.addf %137, %139 : vector<2x128xf32>
    %cst_66 = arith.constant 0.000000e+00 : f32
    %141 = vector.broadcast %cst_66 : f32 to vector<2x128xf32>
    %142 = arith.maximumf %140, %141 : vector<2x128xf32>
    %c6_67 = arith.constant 6 : index
    %143 = memref.load %arg5[%c6_67] : memref<16xf32, #tpu.memory_space<smem>>
    %144 = vector.broadcast %143 : f32 to vector<2x128xf32>
    %145 = arith.mulf %142, %144 : vector<2x128xf32>
    %146 = arith.addf %126, %145 : vector<2x128xf32>
    %c0_68 = arith.constant 0 : index
    %c7 = arith.constant 7 : index
    %147 = memref.load %arg3[%c0_68, %c7] : memref<3x16xf32, #tpu.memory_space<smem>>
    %148 = vector.broadcast %147 : f32 to vector<2x128xf32>
    %149 = arith.mulf %1, %148 : vector<2x128xf32>
    %c1_69 = arith.constant 1 : index
    %c7_70 = arith.constant 7 : index
    %150 = memref.load %arg3[%c1_69, %c7_70] : memref<3x16xf32, #tpu.memory_space<smem>>
    %151 = vector.broadcast %150 : f32 to vector<2x128xf32>
    %152 = arith.mulf %3, %151 : vector<2x128xf32>
    %153 = arith.addf %149, %152 : vector<2x128xf32>
    %c2_71 = arith.constant 2 : index
    %c7_72 = arith.constant 7 : index
    %154 = memref.load %arg3[%c2_71, %c7_72] : memref<3x16xf32, #tpu.memory_space<smem>>
    %155 = vector.broadcast %154 : f32 to vector<2x128xf32>
    %156 = arith.mulf %5, %155 : vector<2x128xf32>
    %157 = arith.addf %153, %156 : vector<2x128xf32>
    %c7_73 = arith.constant 7 : index
    %158 = memref.load %arg4[%c7_73] : memref<16xf32, #tpu.memory_space<smem>>
    %159 = vector.broadcast %158 : f32 to vector<2x128xf32>
    %160 = arith.addf %157, %159 : vector<2x128xf32>
    %cst_74 = arith.constant 0.000000e+00 : f32
    %161 = vector.broadcast %cst_74 : f32 to vector<2x128xf32>
    %162 = arith.maximumf %160, %161 : vector<2x128xf32>
    %c7_75 = arith.constant 7 : index
    %163 = memref.load %arg5[%c7_75] : memref<16xf32, #tpu.memory_space<smem>>
    %164 = vector.broadcast %163 : f32 to vector<2x128xf32>
    %165 = arith.mulf %162, %164 : vector<2x128xf32>
    %166 = arith.addf %146, %165 : vector<2x128xf32>
    %c0_76 = arith.constant 0 : index
    %c8 = arith.constant 8 : index
    %167 = memref.load %arg3[%c0_76, %c8] : memref<3x16xf32, #tpu.memory_space<smem>>
    %168 = vector.broadcast %167 : f32 to vector<2x128xf32>
    %169 = arith.mulf %1, %168 : vector<2x128xf32>
    %c1_77 = arith.constant 1 : index
    %c8_78 = arith.constant 8 : index
    %170 = memref.load %arg3[%c1_77, %c8_78] : memref<3x16xf32, #tpu.memory_space<smem>>
    %171 = vector.broadcast %170 : f32 to vector<2x128xf32>
    %172 = arith.mulf %3, %171 : vector<2x128xf32>
    %173 = arith.addf %169, %172 : vector<2x128xf32>
    %c2_79 = arith.constant 2 : index
    %c8_80 = arith.constant 8 : index
    %174 = memref.load %arg3[%c2_79, %c8_80] : memref<3x16xf32, #tpu.memory_space<smem>>
    %175 = vector.broadcast %174 : f32 to vector<2x128xf32>
    %176 = arith.mulf %5, %175 : vector<2x128xf32>
    %177 = arith.addf %173, %176 : vector<2x128xf32>
    %c8_81 = arith.constant 8 : index
    %178 = memref.load %arg4[%c8_81] : memref<16xf32, #tpu.memory_space<smem>>
    %179 = vector.broadcast %178 : f32 to vector<2x128xf32>
    %180 = arith.addf %177, %179 : vector<2x128xf32>
    %cst_82 = arith.constant 0.000000e+00 : f32
    %181 = vector.broadcast %cst_82 : f32 to vector<2x128xf32>
    %182 = arith.maximumf %180, %181 : vector<2x128xf32>
    %c8_83 = arith.constant 8 : index
    %183 = memref.load %arg5[%c8_83] : memref<16xf32, #tpu.memory_space<smem>>
    %184 = vector.broadcast %183 : f32 to vector<2x128xf32>
    %185 = arith.mulf %182, %184 : vector<2x128xf32>
    %186 = arith.addf %166, %185 : vector<2x128xf32>
    %c0_84 = arith.constant 0 : index
    %c9 = arith.constant 9 : index
    %187 = memref.load %arg3[%c0_84, %c9] : memref<3x16xf32, #tpu.memory_space<smem>>
    %188 = vector.broadcast %187 : f32 to vector<2x128xf32>
    %189 = arith.mulf %1, %188 : vector<2x128xf32>
    %c1_85 = arith.constant 1 : index
    %c9_86 = arith.constant 9 : index
    %190 = memref.load %arg3[%c1_85, %c9_86] : memref<3x16xf32, #tpu.memory_space<smem>>
    %191 = vector.broadcast %190 : f32 to vector<2x128xf32>
    %192 = arith.mulf %3, %191 : vector<2x128xf32>
    %193 = arith.addf %189, %192 : vector<2x128xf32>
    %c2_87 = arith.constant 2 : index
    %c9_88 = arith.constant 9 : index
    %194 = memref.load %arg3[%c2_87, %c9_88] : memref<3x16xf32, #tpu.memory_space<smem>>
    %195 = vector.broadcast %194 : f32 to vector<2x128xf32>
    %196 = arith.mulf %5, %195 : vector<2x128xf32>
    %197 = arith.addf %193, %196 : vector<2x128xf32>
    %c9_89 = arith.constant 9 : index
    %198 = memref.load %arg4[%c9_89] : memref<16xf32, #tpu.memory_space<smem>>
    %199 = vector.broadcast %198 : f32 to vector<2x128xf32>
    %200 = arith.addf %197, %199 : vector<2x128xf32>
    %cst_90 = arith.constant 0.000000e+00 : f32
    %201 = vector.broadcast %cst_90 : f32 to vector<2x128xf32>
    %202 = arith.maximumf %200, %201 : vector<2x128xf32>
    %c9_91 = arith.constant 9 : index
    %203 = memref.load %arg5[%c9_91] : memref<16xf32, #tpu.memory_space<smem>>
    %204 = vector.broadcast %203 : f32 to vector<2x128xf32>
    %205 = arith.mulf %202, %204 : vector<2x128xf32>
    %206 = arith.addf %186, %205 : vector<2x128xf32>
    %c0_92 = arith.constant 0 : index
    %c10 = arith.constant 10 : index
    %207 = memref.load %arg3[%c0_92, %c10] : memref<3x16xf32, #tpu.memory_space<smem>>
    %208 = vector.broadcast %207 : f32 to vector<2x128xf32>
    %209 = arith.mulf %1, %208 : vector<2x128xf32>
    %c1_93 = arith.constant 1 : index
    %c10_94 = arith.constant 10 : index
    %210 = memref.load %arg3[%c1_93, %c10_94] : memref<3x16xf32, #tpu.memory_space<smem>>
    %211 = vector.broadcast %210 : f32 to vector<2x128xf32>
    %212 = arith.mulf %3, %211 : vector<2x128xf32>
    %213 = arith.addf %209, %212 : vector<2x128xf32>
    %c2_95 = arith.constant 2 : index
    %c10_96 = arith.constant 10 : index
    %214 = memref.load %arg3[%c2_95, %c10_96] : memref<3x16xf32, #tpu.memory_space<smem>>
    %215 = vector.broadcast %214 : f32 to vector<2x128xf32>
    %216 = arith.mulf %5, %215 : vector<2x128xf32>
    %217 = arith.addf %213, %216 : vector<2x128xf32>
    %c10_97 = arith.constant 10 : index
    %218 = memref.load %arg4[%c10_97] : memref<16xf32, #tpu.memory_space<smem>>
    %219 = vector.broadcast %218 : f32 to vector<2x128xf32>
    %220 = arith.addf %217, %219 : vector<2x128xf32>
    %cst_98 = arith.constant 0.000000e+00 : f32
    %221 = vector.broadcast %cst_98 : f32 to vector<2x128xf32>
    %222 = arith.maximumf %220, %221 : vector<2x128xf32>
    %c10_99 = arith.constant 10 : index
    %223 = memref.load %arg5[%c10_99] : memref<16xf32, #tpu.memory_space<smem>>
    %224 = vector.broadcast %223 : f32 to vector<2x128xf32>
    %225 = arith.mulf %222, %224 : vector<2x128xf32>
    %226 = arith.addf %206, %225 : vector<2x128xf32>
    %c0_100 = arith.constant 0 : index
    %c11 = arith.constant 11 : index
    %227 = memref.load %arg3[%c0_100, %c11] : memref<3x16xf32, #tpu.memory_space<smem>>
    %228 = vector.broadcast %227 : f32 to vector<2x128xf32>
    %229 = arith.mulf %1, %228 : vector<2x128xf32>
    %c1_101 = arith.constant 1 : index
    %c11_102 = arith.constant 11 : index
    %230 = memref.load %arg3[%c1_101, %c11_102] : memref<3x16xf32, #tpu.memory_space<smem>>
    %231 = vector.broadcast %230 : f32 to vector<2x128xf32>
    %232 = arith.mulf %3, %231 : vector<2x128xf32>
    %233 = arith.addf %229, %232 : vector<2x128xf32>
    %c2_103 = arith.constant 2 : index
    %c11_104 = arith.constant 11 : index
    %234 = memref.load %arg3[%c2_103, %c11_104] : memref<3x16xf32, #tpu.memory_space<smem>>
    %235 = vector.broadcast %234 : f32 to vector<2x128xf32>
    %236 = arith.mulf %5, %235 : vector<2x128xf32>
    %237 = arith.addf %233, %236 : vector<2x128xf32>
    %c11_105 = arith.constant 11 : index
    %238 = memref.load %arg4[%c11_105] : memref<16xf32, #tpu.memory_space<smem>>
    %239 = vector.broadcast %238 : f32 to vector<2x128xf32>
    %240 = arith.addf %237, %239 : vector<2x128xf32>
    %cst_106 = arith.constant 0.000000e+00 : f32
    %241 = vector.broadcast %cst_106 : f32 to vector<2x128xf32>
    %242 = arith.maximumf %240, %241 : vector<2x128xf32>
    %c11_107 = arith.constant 11 : index
    %243 = memref.load %arg5[%c11_107] : memref<16xf32, #tpu.memory_space<smem>>
    %244 = vector.broadcast %243 : f32 to vector<2x128xf32>
    %245 = arith.mulf %242, %244 : vector<2x128xf32>
    %246 = arith.addf %226, %245 : vector<2x128xf32>
    %c0_108 = arith.constant 0 : index
    %c12 = arith.constant 12 : index
    %247 = memref.load %arg3[%c0_108, %c12] : memref<3x16xf32, #tpu.memory_space<smem>>
    %248 = vector.broadcast %247 : f32 to vector<2x128xf32>
    %249 = arith.mulf %1, %248 : vector<2x128xf32>
    %c1_109 = arith.constant 1 : index
    %c12_110 = arith.constant 12 : index
    %250 = memref.load %arg3[%c1_109, %c12_110] : memref<3x16xf32, #tpu.memory_space<smem>>
    %251 = vector.broadcast %250 : f32 to vector<2x128xf32>
    %252 = arith.mulf %3, %251 : vector<2x128xf32>
    %253 = arith.addf %249, %252 : vector<2x128xf32>
    %c2_111 = arith.constant 2 : index
    %c12_112 = arith.constant 12 : index
    %254 = memref.load %arg3[%c2_111, %c12_112] : memref<3x16xf32, #tpu.memory_space<smem>>
    %255 = vector.broadcast %254 : f32 to vector<2x128xf32>
    %256 = arith.mulf %5, %255 : vector<2x128xf32>
    %257 = arith.addf %253, %256 : vector<2x128xf32>
    %c12_113 = arith.constant 12 : index
    %258 = memref.load %arg4[%c12_113] : memref<16xf32, #tpu.memory_space<smem>>
    %259 = vector.broadcast %258 : f32 to vector<2x128xf32>
    %260 = arith.addf %257, %259 : vector<2x128xf32>
    %cst_114 = arith.constant 0.000000e+00 : f32
    %261 = vector.broadcast %cst_114 : f32 to vector<2x128xf32>
    %262 = arith.maximumf %260, %261 : vector<2x128xf32>
    %c12_115 = arith.constant 12 : index
    %263 = memref.load %arg5[%c12_115] : memref<16xf32, #tpu.memory_space<smem>>
    %264 = vector.broadcast %263 : f32 to vector<2x128xf32>
    %265 = arith.mulf %262, %264 : vector<2x128xf32>
    %266 = arith.addf %246, %265 : vector<2x128xf32>
    %c0_116 = arith.constant 0 : index
    %c13 = arith.constant 13 : index
    %267 = memref.load %arg3[%c0_116, %c13] : memref<3x16xf32, #tpu.memory_space<smem>>
    %268 = vector.broadcast %267 : f32 to vector<2x128xf32>
    %269 = arith.mulf %1, %268 : vector<2x128xf32>
    %c1_117 = arith.constant 1 : index
    %c13_118 = arith.constant 13 : index
    %270 = memref.load %arg3[%c1_117, %c13_118] : memref<3x16xf32, #tpu.memory_space<smem>>
    %271 = vector.broadcast %270 : f32 to vector<2x128xf32>
    %272 = arith.mulf %3, %271 : vector<2x128xf32>
    %273 = arith.addf %269, %272 : vector<2x128xf32>
    %c2_119 = arith.constant 2 : index
    %c13_120 = arith.constant 13 : index
    %274 = memref.load %arg3[%c2_119, %c13_120] : memref<3x16xf32, #tpu.memory_space<smem>>
    %275 = vector.broadcast %274 : f32 to vector<2x128xf32>
    %276 = arith.mulf %5, %275 : vector<2x128xf32>
    %277 = arith.addf %273, %276 : vector<2x128xf32>
    %c13_121 = arith.constant 13 : index
    %278 = memref.load %arg4[%c13_121] : memref<16xf32, #tpu.memory_space<smem>>
    %279 = vector.broadcast %278 : f32 to vector<2x128xf32>
    %280 = arith.addf %277, %279 : vector<2x128xf32>
    %cst_122 = arith.constant 0.000000e+00 : f32
    %281 = vector.broadcast %cst_122 : f32 to vector<2x128xf32>
    %282 = arith.maximumf %280, %281 : vector<2x128xf32>
    %c13_123 = arith.constant 13 : index
    %283 = memref.load %arg5[%c13_123] : memref<16xf32, #tpu.memory_space<smem>>
    %284 = vector.broadcast %283 : f32 to vector<2x128xf32>
    %285 = arith.mulf %282, %284 : vector<2x128xf32>
    %286 = arith.addf %266, %285 : vector<2x128xf32>
    %c0_124 = arith.constant 0 : index
    %c14 = arith.constant 14 : index
    %287 = memref.load %arg3[%c0_124, %c14] : memref<3x16xf32, #tpu.memory_space<smem>>
    %288 = vector.broadcast %287 : f32 to vector<2x128xf32>
    %289 = arith.mulf %1, %288 : vector<2x128xf32>
    %c1_125 = arith.constant 1 : index
    %c14_126 = arith.constant 14 : index
    %290 = memref.load %arg3[%c1_125, %c14_126] : memref<3x16xf32, #tpu.memory_space<smem>>
    %291 = vector.broadcast %290 : f32 to vector<2x128xf32>
    %292 = arith.mulf %3, %291 : vector<2x128xf32>
    %293 = arith.addf %289, %292 : vector<2x128xf32>
    %c2_127 = arith.constant 2 : index
    %c14_128 = arith.constant 14 : index
    %294 = memref.load %arg3[%c2_127, %c14_128] : memref<3x16xf32, #tpu.memory_space<smem>>
    %295 = vector.broadcast %294 : f32 to vector<2x128xf32>
    %296 = arith.mulf %5, %295 : vector<2x128xf32>
    %297 = arith.addf %293, %296 : vector<2x128xf32>
    %c14_129 = arith.constant 14 : index
    %298 = memref.load %arg4[%c14_129] : memref<16xf32, #tpu.memory_space<smem>>
    %299 = vector.broadcast %298 : f32 to vector<2x128xf32>
    %300 = arith.addf %297, %299 : vector<2x128xf32>
    %cst_130 = arith.constant 0.000000e+00 : f32
    %301 = vector.broadcast %cst_130 : f32 to vector<2x128xf32>
    %302 = arith.maximumf %300, %301 : vector<2x128xf32>
    %c14_131 = arith.constant 14 : index
    %303 = memref.load %arg5[%c14_131] : memref<16xf32, #tpu.memory_space<smem>>
    %304 = vector.broadcast %303 : f32 to vector<2x128xf32>
    %305 = arith.mulf %302, %304 : vector<2x128xf32>
    %306 = arith.addf %286, %305 : vector<2x128xf32>
    %c0_132 = arith.constant 0 : index
    %c15 = arith.constant 15 : index
    %307 = memref.load %arg3[%c0_132, %c15] : memref<3x16xf32, #tpu.memory_space<smem>>
    %308 = vector.broadcast %307 : f32 to vector<2x128xf32>
    %309 = arith.mulf %1, %308 : vector<2x128xf32>
    %c1_133 = arith.constant 1 : index
    %c15_134 = arith.constant 15 : index
    %310 = memref.load %arg3[%c1_133, %c15_134] : memref<3x16xf32, #tpu.memory_space<smem>>
    %311 = vector.broadcast %310 : f32 to vector<2x128xf32>
    %312 = arith.mulf %3, %311 : vector<2x128xf32>
    %313 = arith.addf %309, %312 : vector<2x128xf32>
    %c2_135 = arith.constant 2 : index
    %c15_136 = arith.constant 15 : index
    %314 = memref.load %arg3[%c2_135, %c15_136] : memref<3x16xf32, #tpu.memory_space<smem>>
    %315 = vector.broadcast %314 : f32 to vector<2x128xf32>
    %316 = arith.mulf %5, %315 : vector<2x128xf32>
    %317 = arith.addf %313, %316 : vector<2x128xf32>
    %c15_137 = arith.constant 15 : index
    %318 = memref.load %arg4[%c15_137] : memref<16xf32, #tpu.memory_space<smem>>
    %319 = vector.broadcast %318 : f32 to vector<2x128xf32>
    %320 = arith.addf %317, %319 : vector<2x128xf32>
    %cst_138 = arith.constant 0.000000e+00 : f32
    %321 = vector.broadcast %cst_138 : f32 to vector<2x128xf32>
    %322 = arith.maximumf %320, %321 : vector<2x128xf32>
    %c15_139 = arith.constant 15 : index
    %323 = memref.load %arg5[%c15_139] : memref<16xf32, #tpu.memory_space<smem>>
    %324 = vector.broadcast %323 : f32 to vector<2x128xf32>
    %325 = arith.mulf %322, %324 : vector<2x128xf32>
    %326 = arith.addf %306, %325 : vector<2x128xf32>
    %c0_140 = arith.constant 0 : index
    %327 = memref.load %arg6[%c0_140] : memref<1xf32, #tpu.memory_space<smem>>
    %328 = vector.broadcast %327 : f32 to vector<2x128xf32>
    %329 = arith.addf %326, %328 : vector<2x128xf32>
    %330 = math.tanh %329 : vector<2x128xf32>
    %c0_141 = arith.constant 0 : index
    %c0_142 = arith.constant 0 : index
    %c0_143 = arith.constant 0 : index
    %331 = vector.load %arg7[%c0_141, %c0_142, %c0_143] : memref<1x2x128xf32, #tpu.memory_space<vmem>>, vector<1x2x128xf32>
    %332 = vector.shape_cast %331 : vector<1x2x128xf32> to vector<2x128xf32>
    %333 = vector.shape_cast %330 : vector<2x128xf32> to vector<1x2x128xf32>
    tpu.vector_store %arg7[%c0_141, %c0_142, %c0_143], %333 {strides = array<i32>} : memref<1x2x128xf32, #tpu.memory_space<vmem>>, vector<1x2x128xf32>,
    return
  }
  func.func @transform_0(%arg0: i32, %arg1: i32) -> (i32, i32, i32, i32) {
    %c0_i32 = arith.constant 0 : i32
    %c0_i32_0 = arith.constant 0 : i32
    %c0_i32_1 = arith.constant 0 : i32
    return %arg0, %c0_i32, %arg1, %c0_i32_0 : i32, i32, i32, i32
  }
  func.func @transform_1(%arg0: i32, %arg1: i32) -> (i32, i32) {
    %c0_i32 = arith.constant 0 : i32
    %c0_i32_0 = arith.constant 0 : i32
    %c0_i32_1 = arith.constant 0 : i32
    return %c0_i32, %c0_i32_0 : i32, i32
  }
  func.func @transform_2(%arg0: i32, %arg1: i32) -> i32 {
    %c0_i32 = arith.constant 0 : i32
    %c0_i32_0 = arith.constant 0 : i32
    return %c0_i32 : i32
  }
  func.func @transform_3(%arg0: i32, %arg1: i32) -> i32 {
    %c0_i32 = arith.constant 0 : i32
    %c0_i32_0 = arith.constant 0 : i32
    return %c0_i32 : i32
  }
  func.func @transform_4(%arg0: i32, %arg1: i32) -> i32 {
    %c0_i32 = arith.constant 0 : i32
    %c0_i32_0 = arith.constant 0 : i32
    return %c0_i32 : i32
  }
  func.func @transform_5(%arg0: i32, %arg1: i32) -> (i32, i32, i32) {
    %c0_i32 = arith.constant 0 : i32
    %c0_i32_0 = arith.constant 0 : i32
    return %arg0, %arg1, %c0_i32 : i32, i32, i32
  }
}

</mosaic_0001>

<llo_original>
// kernel: tpu_custom_call.1
$region0: #{tpu_custom_call.1}
  #allocation0 [shape = 'u32[]', space=smem, size = 0x4, offset = 0x4, fixed_abs, tag = 'smem constant byte address 0x4 - core index']
  #allocation1 [shape = 'u32[144,128]{1,0:T(1,128)}', space=vmem, size = 0x12000, scoped, tag = 'internal scratch']
  #allocation2 [shape = 'f32[1]{0:T(128)S(6)}', space=smem, size = 0x200, scoped, tag = 'scoped memory for tpu_custom_call.1']
  %s0 = inlined_call_operand.hbm [shape: f32[2,3,2,128], index: 0, kind: input, shape index: {}]
  %s1 = inlined_call_operand.hbm [shape: f32[3,16], index: 1, kind: input, shape index: {}]
  %s2 = inlined_call_operand.vmem [shape: f32[16], index: 2, kind: input, shape index: {}]
  %s3 = inlined_call_operand.vmem [shape: f32[16], index: 3, kind: input, shape index: {}]
  %s4 = inlined_call_operand.<no memory space> [shape: f32[1], index: 4, kind: input, shape index: {}]
  %s5 = inlined_call_operand.hbm [shape: f32[2,2,128], index: 5, kind: output, shape index: {}]
  %s6 = sld [smem:[#allocation0]]
  $region69: #{tpu_custom_call.1} parent=0
    _
  %s8 = ssub.s32 1, %s6
  %s9 = scalar_select 0, %s8, %s6
  %10 = sst [smem:[#allocation2]] %s4
  $region1: #{tpu_custom_call.1} parent=0
    #allocation3 [shape = 'u8[6144]{0}', space=vmem, size = 0x1800, scoped, tag = 'input window, operand 0']
    #allocation4 [shape = 's32[2]{0}', space=sflag, size = 0x8, scoped, tag = 'scoped memory for tpu_custom_call.1']
    #allocation5 [shape = 's32[2]{0}', space=sflag, size = 0x8, scoped, tag = 'scoped memory for tpu_custom_call.1']
    #allocation6 [shape = 's32[2]{0}', space=sflag, size = 0x8, scoped, tag = 'scoped memory for tpu_custom_call.1']
    #allocation7 [shape = 's32[2]{0}', space=sflag, size = 0x8, scoped, tag = 'scoped memory for tpu_custom_call.1']
    #allocation8 [shape = 'u8[2048]{0}', space=smem, size = 0x800, scoped, tag = 'input window, operand 1, single buffered']
    #allocation9 [shape = 'u8[512]{0}', space=smem, size = 0x200, scoped, tag = 'input window, operand 2, single buffered']
    #allocation10 [shape = 'u8[512]{0}', space=smem, size = 0x200, scoped, tag = 'input window, operand 3, single buffered']
    #allocation11 [shape = 's32[1]{0}', space=sflag, size = 0x4, scoped, tag = 'scoped memory for tpu_custom_call.1']
    #allocation12 [shape = 'u8[2048]{0}', space=vmem, size = 0x800, scoped, tag = 'output window, operand 0']
    %11 = vsyncpa [#allocation4], 0
    %s12 = scalar_lea.sflag [#allocation4], 1
    %13 = vsyncpa %s12, 0
    %14 = vsyncpa [#allocation6], 0
    %15 = vsyncpa [#allocation7], 0
    %16 = vsyncpa [#allocation11], 0
    %17 = vsyncpa [#allocation5], 0
    %s18 = scalar_lea.sflag [#allocation5], 1
    %19 = vsyncpa %s18, 0
    loop: start=0, step=1, limit=4
    $region2: #{tpu_custom_call.1} parent=1 // loop_pre_header
      _
    $region3: #{tpu_custom_call.1} parent=1 // loop_header
      %s21 = sphi 0, %s25
      %p22 = scmp.ge.s32.totalorder %s21, 4
      %s28 = sphi 0, %s40
      %s29 = sphi 0, %s36
      %s30 = sphi 0, %s28
      %s31 = sphi 0, %s29
      %s32 = sphi 0, %s30
      %s33 = sphi 0, %s31
      %s45 = sphi 0, %s47
      %s48 = sphi 0, %s45
      %s49 = sphi 0, %s48
      %s65 = sphi 0, %s49
      %s69 = sphi 0, %s69
      %s71 = sphi 0, %s69
      %s72 = sphi 0, %s71
      %s86 = sphi 0, %s72
      %s90 = sphi 0, %s90
      %s92 = sphi 0, %s90
      %s93 = sphi 0, %s92
      %s107 = sphi 0, %s93
      %s111 = sphi 0, %s111
      %s113 = sphi 0, %s111
      %s114 = sphi 0, %s113
      %s128 = sphi 0, %s114
      %s132 = sphi 0, %s132
      %s134 = sphi 0, %s132
      %s135 = sphi 0, %s134
      %s149 = sphi 0, %s135
      %s157 = sphi 0, %s159
      %s160 = sphi 0, %s157
      %s161 = sphi 0, %s160
      %s177 = sphi 0, %s161
    $region4: #{tpu_custom_call.1} parent=1 // loop_header_branch
      %24 = sbr.rel (%p22) target = $region8
    $region5: #{tpu_custom_call.1} parent=1 // loop_body
      %s26 = ssub.s32 %s21, 1
      %s27 = ssub.s32 %s21, 2
      %s34 = sadd.s32 1, %s29
      %p35 = scmp.ge.s32.totalorder %s34, 1
      %s36 = scalar_select %p35, 0, %s34
      %s37 = sadd.s32 1, %s28
      %s38 = scalar_select %p35, %s37, %s28
      %p39 = scmp.ge.s32.totalorder %s38, 2
      %s40 = scalar_select %p39, 0, %s38
      %s41 = ssub.s32 %s28, %s40
      %s42 = ssub.s32 %s29, %s36
      %s43 = sor.u32 %s41, %s42
      %p44 = scmp.eq.s32.totalorder %s43, 0
      %s46 = sadd.s32 %s45, 1
      %s47 = scalar_select %p44, %s45, %s46
      %p50 = pneg %p44
      %p51 = scmp.eq.s32.totalorder %s21, 1
      %p52 = por %p50, %p51
      %p53 = scmp.ne.s32.totalorder %s45, %s48
      %p54 = scmp.eq.s32.totalorder %s21, 0
      %p55 = por %p53, %p54
      %p56 = scmp.ne.s32.totalorder %s45, %s48
      %p57 = scmp.eq.s32.totalorder %s26, 1
      %p58 = por %p56, %p57
      %p59 = scmp.ne.s32.totalorder %s48, %s49
      %p60 = scmp.eq.s32.totalorder %s26, 0
      %p61 = por %p59, %p60
      %p62 = scmp.ne.s32.totalorder %s48, %s49
      %p63 = scmp.eq.s32.totalorder %s27, 1
      %p64 = por %p62, %p63
      %p66 = scmp.ne.s32.totalorder %s49, %s65
      %p67 = scmp.eq.s32.totalorder %s27, 0
      %p68 = por %p66, %p67
      %s70 = sadd.s32 %s69, 1
      %p73 = scmp.eq.s32.totalorder %s21, 1
      %p74 = scmp.ne.s32.totalorder %s69, %s71
      %p75 = scmp.eq.s32.totalorder %s21, 0
      %p76 = por %p74, %p75
      %p77 = scmp.ne.s32.totalorder %s69, %s71
      %p78 = scmp.eq.s32.totalorder %s26, 1
      %p79 = por %p77, %p78
      %p80 = scmp.ne.s32.totalorder %s71, %s72
      %p81 = scmp.eq.s32.totalorder %s26, 0
      %p82 = por %p80, %p81
      %p83 = scmp.ne.s32.totalorder %s71, %s72
      %p84 = scmp.eq.s32.totalorder %s27, 1
      %p85 = por %p83, %p84
      %p87 = scmp.ne.s32.totalorder %s72, %s86
      %p88 = scmp.eq.s32.totalorder %s27, 0
      %p89 = por %p87, %p88
      %s91 = sadd.s32 %s90, 1
      %p94 = scmp.eq.s32.totalorder %s21, 1
      %p95 = scmp.ne.s32.totalorder %s90, %s92
      %p96 = scmp.eq.s32.totalorder %s21, 0
      %p97 = por %p95, %p96
      %p98 = scmp.ne.s32.totalorder %s90, %s92
      %p99 = scmp.eq.s32.totalorder %s26, 1
      %p100 = por %p98, %p99
      %p101 = scmp.ne.s32.totalorder %s92, %s93
      %p102 = scmp.eq.s32.totalorder %s26, 0
      %p103 = por %p101, %p102
      %p104 = scmp.ne.s32.totalorder %s92, %s93
      %p105 = scmp.eq.s32.totalorder %s27, 1
      %p106 = por %p104, %p105
      %p108 = scmp.ne.s32.totalorder %s93, %s107
      %p109 = scmp.eq.s32.totalorder %s27, 0
      %p110 = por %p108, %p109
      %s112 = sadd.s32 %s111, 1
      %p115 = scmp.eq.s32.totalorder %s21, 1
      %p116 = scmp.ne.s32.totalorder %s111, %s113
      %p117 = scmp.eq.s32.totalorder %s21, 0
      %p118 = por %p116, %p117
      %p119 = scmp.ne.s32.totalorder %s111, %s113
      %p120 = scmp.eq.s32.totalorder %s26, 1
      %p121 = por %p119, %p120
      %p122 = scmp.ne.s32.totalorder %s113, %s114
      %p123 = scmp.eq.s32.totalorder %s26, 0
      %p124 = por %p122, %p123
      %p125 = scmp.ne.s32.totalorder %s113, %s114
      %p126 = scmp.eq.s32.totalorder %s27, 1
      %p127 = por %p125, %p126
      %p129 = scmp.ne.s32.totalorder %s114, %s128
      %p130 = scmp.eq.s32.totalorder %s27, 0
      %p131 = por %p129, %p130
      %s133 = sadd.s32 %s132, 1
      %p136 = scmp.eq.s32.totalorder %s21, 1
      %p137 = scmp.ne.s32.totalorder %s132, %s134
      %p138 = scmp.eq.s32.totalorder %s21, 0
      %p139 = por %p137, %p138
      %p140 = scmp.ne.s32.totalorder %s132, %s134
      %p141 = scmp.eq.s32.totalorder %s26, 1
      %p142 = por %p140, %p141
      %p143 = scmp.ne.s32.totalorder %s134, %s135
      %p144 = scmp.eq.s32.totalorder %s26, 0
      %p145 = por %p143, %p144
      %p146 = scmp.ne.s32.totalorder %s134, %s135
      %p147 = scmp.eq.s32.totalorder %s27, 1
      %p148 = por %p146, %p147
      %p150 = scmp.ne.s32.totalorder %s135, %s149
      %p151 = scmp.eq.s32.totalorder %s27, 0
      %p152 = por %p150, %p151
      %s153 = ssub.s32 %s28, %s40
      %s154 = ssub.s32 %s29, %s36
      %s155 = sor.u32 %s153, %s154
      %p156 = scmp.eq.s32.totalorder %s155, 0
      %s158 = sadd.s32 %s157, 1
      %s159 = scalar_select %p156, %s157, %s158
      %p162 = pneg %p156
      %p163 = scmp.eq.s32.totalorder %s21, 1
      %p164 = por %p162, %p163
      %p165 = scmp.ne.s32.totalorder %s157, %s160
      %p166 = scmp.eq.s32.totalorder %s21, 0
      %p167 = por %p165, %p166
      %p168 = scmp.ne.s32.totalorder %s157, %s160
      %p169 = scmp.eq.s32.totalorder %s26, 1
      %p170 = por %p168, %p169
      %p171 = scmp.ne.s32.totalorder %s160, %s161
      %p172 = scmp.eq.s32.totalorder %s26, 0
      %p173 = por %p171, %p172
      %p174 = scmp.ne.s32.totalorder %s160, %s161
      %p175 = scmp.eq.s32.totalorder %s27, 1
      %p176 = por %p174, %p175
      %p178 = scmp.ne.s32.totalorder %s161, %s177
      %p179 = scmp.eq.s32.totalorder %s27, 0
      %p180 = por %p178, %p179
      %p181 = scmp.le.s32.totalorder 1, %s21
      %p182 = scmp.lt.s32.totalorder %s21, 3
      %p183 = pnand %p181, %p182
      %p184 = pneg %p183
      // Predicated region
      $region9: #{tpu_custom_call.1} parent=5 // pred_check
        _
      $region10: #{tpu_custom_call.1} parent=5 // pred_check_branch
        %186 = sbr.rel (%p183) target = $region12
      $region11: #{tpu_custom_call.1} parent=5 // pred_region
        %s187 = ssub.s32 %s21, 1
        // Predicated region
        $region13: #{tpu_custom_call.1} parent=11 // pred_check
          %p188 = pneg %p82
        $region14: #{tpu_custom_call.1} parent=11 // pred_check_branch
          %190 = sbr.rel (%p188) target = $region16
        $region15: #{tpu_custom_call.1} parent=11 // pred_region
          %s192 = ssub.s32 64, 64
          %193 = vsyncadd [#allocation6], %s192
          %196 = dma.hbm_to_smem %s1, 64, [#allocation8], [#allocation6]
        $region16: #{tpu_custom_call.1} parent=11 // pred_fallthru
          _
        // Predicated region
        $region17: #{tpu_custom_call.1} parent=11 // pred_check
          %p197 = pneg %p103
        $region18: #{tpu_custom_call.1} parent=11 // pred_check_branch
          %199 = sbr.rel (%p197) target = $region20
        $region19: #{tpu_custom_call.1} parent=11 // pred_region
          %s201 = ssub.s32 16, 16
          %202 = vsyncadd [#allocation7], %s201
          %s204 = sshll.u32 %s2, 4
          %s205 = int_to_ptr.vmem [resolvable:$true] %s204
          %207 = dma.vmem_to_smem %s205, 16, [#allocation9], [#allocation7]
        $region20: #{tpu_custom_call.1} parent=11 // pred_fallthru
          _
        // Predicated region
        $region21: #{tpu_custom_call.1} parent=11 // pred_check
          %p208 = pneg %p124
        $region22: #{tpu_custom_call.1} parent=11 // pred_check_branch
          %210 = sbr.rel (%p208) target = $region24
        $region23: #{tpu_custom_call.1} parent=11 // pred_region
          %s212 = ssub.s32 16, 16
          %213 = vsyncadd [#allocation11], %s212
          %s215 = sshll.u32 %s3, 4
          %s216 = int_to_ptr.vmem [resolvable:$true] %s215
          %218 = dma.vmem_to_smem %s216, 16, [#allocation10], [#allocation11]
        $region24: #{tpu_custom_call.1} parent=11 // pred_fallthru
          _
        // Predicated region
        $region25: #{tpu_custom_call.1} parent=11 // pred_check
          %p219 = pneg %p145
        $region26: #{tpu_custom_call.1} parent=11 // pred_check_branch
          %221 = sbr.rel (%p219) target = $region28
        $region27: #{tpu_custom_call.1} parent=11 // pred_region
          _
        $region28: #{tpu_custom_call.1} parent=11 // pred_fallthru
          _
      $region12: #{tpu_custom_call.1} parent=5 // pred_fallthru
        _
      %p222 = scmp.lt.s32.totalorder %s21, 2
      // Predicated region
      $region29: #{tpu_custom_call.1} parent=5 // pred_check
        %p223 = pneg %p222
      $region30: #{tpu_custom_call.1} parent=5 // pred_check_branch
        %225 = sbr.rel (%p223) target = $region32
      $region31: #{tpu_custom_call.1} parent=5 // pred_region
        // Predicated region
        $region33: #{tpu_custom_call.1} parent=31 // pred_check
          %p226 = pneg %p55
        $region34: #{tpu_custom_call.1} parent=31 // pred_check_branch
          %228 = sbr.rel (%p226) target = $region36
        $region35: #{tpu_custom_call.1} parent=31 // pred_region
          %s229 = sand.u32 %s45, 1
          %s230 = scalar_lea.sflag [#allocation4], %s229
          %s231 = sand.u32 %s45, 1
          %s232 = smul.addr %s231, 6
          %s233 = scalar_lea.vmem [#allocation3], %s232
          %s235 = ssub.s32 96, 96
          %236 = vsyncadd %s230, %s235
          %s237 = smul.addr %s28, 3
          %s238 = sadd.s32 %s29, %s237
          %s239 = smul.addr %s238, 32
          %s240 = scalar_lea.hbm %s0, %s239
          %s241 = sshll.u32 %s233, 4
          %s242 = int_to_ptr.vmem [resolvable:$true] %s241
          %247 = dma.hbm_to_vmem [thread:$0]  %s240, 96, %s242, %s230, 32, 32, 2
        $region36: #{tpu_custom_call.1} parent=31 // pred_fallthru
          _
      $region32: #{tpu_custom_call.1} parent=5 // pred_fallthru
        _
      %p248 = scmp.le.s32.totalorder 1, %s21
      %p249 = scmp.lt.s32.totalorder %s21, 3
      %p250 = pnand %p248, %p249
      %p251 = pneg %p250
      // Predicated region
      $region37: #{tpu_custom_call.1} parent=5 // pred_check
        _
      $region38: #{tpu_custom_call.1} parent=5 // pred_check_branch
        %253 = sbr.rel (%p250) target = $region40
      $region39: #{tpu_custom_call.1} parent=5 // pred_region
        %s254 = ssub.s32 %s21, 1
        %s255 = sand.u32 %s48, 1
        %s256 = scalar_lea.sflag [#allocation4], %s255
        %s257 = sand.u32 %s48, 1
        %s258 = smul.addr %s257, 6
        %s259 = scalar_lea.vmem [#allocation3], %s258
        // Predicated region
        $region41: #{tpu_custom_call.1} parent=39 // pred_check
          %p260 = pneg %p61
        $region42: #{tpu_custom_call.1} parent=39 // pred_check_branch
          %262 = sbr.rel (%p260) target = $region44
        $region43: #{tpu_custom_call.1} parent=39 // pred_region
          %263 = dma.done %s256, 96
        $region44: #{tpu_custom_call.1} parent=39 // pred_fallthru
          _
        // Predicated region
        $region45: #{tpu_custom_call.1} parent=39 // pred_check
          %p264 = pneg %p82
        $region46: #{tpu_custom_call.1} parent=39 // pred_check_branch
          %266 = sbr.rel (%p264) target = $region48
        $region47: #{tpu_custom_call.1} parent=39 // pred_region
          %267 = dma.done [#allocation6], 64
        $region48: #{tpu_custom_call.1} parent=39 // pred_fallthru
          _
        // Predicated region
        $region49: #{tpu_custom_call.1} parent=39 // pred_check
          %p268 = pneg %p103
        $region50: #{tpu_custom_call.1} parent=39 // pred_check_branch
          %270 = sbr.rel (%p268) target = $region52
        $region51: #{tpu_custom_call.1} parent=39 // pred_region
          %271 = dma.done [#allocation7], 16
        $region52: #{tpu_custom_call.1} parent=39 // pred_fallthru
          _
        // Predicated region
        $region53: #{tpu_custom_call.1} parent=39 // pred_check
          %p272 = pneg %p124
        $region54: #{tpu_custom_call.1} parent=39 // pred_check_branch
          %274 = sbr.rel (%p272) target = $region56
        $region55: #{tpu_custom_call.1} parent=39 // pred_region
          %275 = dma.done [#allocation11], 16
        $region56: #{tpu_custom_call.1} parent=39 // pred_fallthru
          _
        %276 = sfence
        %s277 = sand.u32 %s48, 1
        %s278 = scalar_lea.sflag [#allocation4], %s277
        %s279 = sand.u32 %s48, 1
        %s280 = smul.addr %s279, 6
        %s281 = scalar_lea.vmem [#allocation3], %s280
        %p282 = pneg %p61
        %p283 = pneg %p58
        %p284 = pneg %p82
        %p285 = pneg %p79
        %p286 = pneg %p103
        %p287 = pneg %p100
        %p288 = pneg %p124
        %p289 = pneg %p121
        %p290 = pneg %p145
        %p291 = pneg %p142
        %p292 = pneg %p173
        %p293 = pneg %p170
        %s294 = sand.u32 %s160, 1
        %s295 = scalar_lea.sflag [#allocation5], %s294
        %s296 = sand.u32 %s160, 1
        %s297 = smul.addr %s296, 2
        %s298 = scalar_lea.vmem [#allocation12], %s297
        %v299 = vld [vmem:[%s259] sm:$0x3]
        %s300 = scalar_lea.vmem %s259, 2 [#allocation3]
        %v301 = vld [vmem:[%s300] sm:$0x3]
        %s302 = scalar_lea.vmem %s259, 4 [#allocation3]
        %v303 = vld [vmem:[%s302] sm:$0x3]
        %s304 = sld [smem:[#allocation8]]
        %v305 = vstv %s304
        %v306 = vmul.f32 %v299, %v305
        %s307 = sld [smem:[#allocation8 + $0x80]]
        %v308 = vstv %s307
        %v309 = vmul.f32 %v301, %v308
        %v310 = vadd.f32 %v306, %v309
        %s311 = sld [smem:[#allocation8 + $0x100]]
        %v312 = vstv %s311
        %v313 = vmul.f32 %v303, %v312
        %v314 = vadd.f32 %v310, %v313
        %s315 = sld [smem:[#allocation9]]
        %v316 = vstv %s315
        %v317 = vadd.f32 %v314, %v316
        %v318 = vmax.f32 %v317, 0.0
        %s319 = sld [smem:[#allocation10]]
        %v320 = vstv %s319
        %v321 = vmul.f32 %v318, %v320
        %v322 = vadd.f32 %v321, 0.0
        %s323 = sld [smem:[#allocation8 + $0x1]]
        %v324 = vstv %s323
        %v325 = vmul.f32 %v299, %v324
        %s326 = sld [smem:[#allocation8 + $0x81]]
        %v327 = vstv %s326
        %v328 = vmul.f32 %v301, %v327
        %v329 = vadd.f32 %v325, %v328
        %s330 = sld [smem:[#allocation8 + $0x101]]
        %v331 = vstv %s330
        %v332 = vmul.f32 %v303, %v331
        %v333 = vadd.f32 %v329, %v332
        %s334 = sld [smem:[#allocation9 + $0x1]]
        %v335 = vstv %s334
        %v336 = vadd.f32 %v333, %v335
        %v337 = vmax.f32 %v336, 0.0
        %s338 = sld [smem:[#allocation10 + $0x1]]
        %v339 = vstv %s338
        %v340 = vmul.f32 %v337, %v339
        %v341 = vadd.f32 %v322, %v340
        %s342 = sld [smem:[#allocation8 + $0x2]]
        %v343 = vstv %s342
        %v344 = vmul.f32 %v299, %v343
        %s345 = sld [smem:[#allocation8 + $0x82]]
        %v346 = vstv %s345
        %v347 = vmul.f32 %v301, %v346
        %v348 = vadd.f32 %v344, %v347
        %s349 = sld [smem:[#allocation8 + $0x102]]
        %v350 = vstv %s349
        %v351 = vmul.f32 %v303, %v350
        %v352 = vadd.f32 %v348, %v351
        %s353 = sld [smem:[#allocation9 + $0x2]]
        %v354 = vstv %s353
        %v355 = vadd.f32 %v352, %v354
        %v356 = vmax.f32 %v355, 0.0
        %s357 = sld [smem:[#allocation10 + $0x2]]
        %v358 = vstv %s357
        %v359 = vmul.f32 %v356, %v358
        %v360 = vadd.f32 %v341, %v359
        %s361 = sld [smem:[#allocation8 + $0x3]]
        %v362 = vstv %s361
        %v363 = vmul.f32 %v299, %v362
        %s364 = sld [smem:[#allocation8 + $0x83]]
        %v365 = vstv %s364
        %v366 = vmul.f32 %v301, %v365
        %v367 = vadd.f32 %v363, %v366
        %s368 = sld [smem:[#allocation8 + $0x103]]
        %v369 = vstv %s368
        %v370 = vmul.f32 %v303, %v369
        %v371 = vadd.f32 %v367, %v370
        %s372 = sld [smem:[#allocation9 + $0x3]]
        %v373 = vstv %s372
        %v374 = vadd.f32 %v371, %v373
        %v375 = vmax.f32 %v374, 0.0
        %s376 = sld [smem:[#allocation10 + $0x3]]
        %v377 = vstv %s376
        %v378 = vmul.f32 %v375, %v377
        %v379 = vadd.f32 %v360, %v378
        %s380 = sld [smem:[#allocation8 + $0x4]]
        %v381 = vstv %s380
        %v382 = vmul.f32 %v299, %v381
        %s383 = sld [smem:[#allocation8 + $0x84]]
        %v384 = vstv %s383
        %v385 = vmul.f32 %v301, %v384
        %v386 = vadd.f32 %v382, %v385
        %s387 = sld [smem:[#allocation8 + $0x104]]
        %v388 = vstv %s387
        %v389 = vmul.f32 %v303, %v388
        %v390 = vadd.f32 %v386, %v389
        %s391 = sld [smem:[#allocation9 + $0x4]]
        %v392 = vstv %s391
        %v393 = vadd.f32 %v390, %v392
        %v394 = vmax.f32 %v393, 0.0
        %s395 = sld [smem:[#allocation10 + $0x4]]
        %v396 = vstv %s395
        %v397 = vmul.f32 %v394, %v396
        %v398 = vadd.f32 %v379, %v397
        %s399 = sld [smem:[#allocation8 + $0x5]]
        %v400 = vstv %s399
        %v401 = vmul.f32 %v299, %v400
        %s402 = sld [smem:[#allocation8 + $0x85]]
        %v403 = vstv %s402
        %v404 = vmul.f32 %v301, %v403
        %v405 = vadd.f32 %v401, %v404
        %s406 = sld [smem:[#allocation8 + $0x105]]
        %v407 = vstv %s406
        %v408 = vmul.f32 %v303, %v407
        %v409 = vadd.f32 %v405, %v408
        %s410 = sld [smem:[#allocation9 + $0x5]]
        %v411 = vstv %s410
        %v412 = vadd.f32 %v409, %v411
        %v413 = vmax.f32 %v412, 0.0
        %s414 = sld [smem:[#allocation10 + $0x5]]
        %v415 = vstv %s414
        %v416 = vmul.f32 %v413, %v415
        %v417 = vadd.f32 %v398, %v416
        %s418 = sld [smem:[#allocation8 + $0x6]]
        %v419 = vstv %s418
        %v420 = vmul.f32 %v299, %v419
        %s421 = sld [smem:[#allocation8 + $0x86]]
        %v422 = vstv %s421
        %v423 = vmul.f32 %v301, %v422
        %v424 = vadd.f32 %v420, %v423
        %s425 = sld [smem:[#allocation8 + $0x106]]
        %v426 = vstv %s425
        %v427 = vmul.f32 %v303, %v426
        %v428 = vadd.f32 %v424, %v427
        %s429 = sld [smem:[#allocation9 + $0x6]]
        %v430 = vstv %s429
        %v431 = vadd.f32 %v428, %v430
        %v432 = vmax.f32 %v431, 0.0
        %s433 = sld [smem:[#allocation10 + $0x6]]
        %v434 = vstv %s433
        %v435 = vmul.f32 %v432, %v434
        %v436 = vadd.f32 %v417, %v435
        %s437 = sld [smem:[#allocation8 + $0x7]]
        %v438 = vstv %s437
        %v439 = vmul.f32 %v299, %v438
        %s440 = sld [smem:[#allocation8 + $0x87]]
        %v441 = vstv %s440
        %v442 = vmul.f32 %v301, %v441
        %v443 = vadd.f32 %v439, %v442
        %s444 = sld [smem:[#allocation8 + $0x107]]
        %v445 = vstv %s444
        %v446 = vmul.f32 %v303, %v445
        %v447 = vadd.f32 %v443, %v446
        %s448 = sld [smem:[#allocation9 + $0x7]]
        %v449 = vstv %s448
        %v450 = vadd.f32 %v447, %v449
        %v451 = vmax.f32 %v450, 0.0
        %s452 = sld [smem:[#allocation10 + $0x7]]
        %v453 = vstv %s452
        %v454 = vmul.f32 %v451, %v453
        %v455 = vadd.f32 %v436, %v454
        %s456 = sld [smem:[#allocation8 + $0x8]]
        %v457 = vstv %s456
        %v458 = vmul.f32 %v299, %v457
        %s459 = sld [smem:[#allocation8 + $0x88]]
        %v460 = vstv %s459
        %v461 = vmul.f32 %v301, %v460
        %v462 = vadd.f32 %v458, %v461
        %s463 = sld [smem:[#allocation8 + $0x108]]
        %v464 = vstv %s463
        %v465 = vmul.f32 %v303, %v464
        %v466 = vadd.f32 %v462, %v465
        %s467 = sld [smem:[#allocation9 + $0x8]]
        %v468 = vstv %s467
        %v469 = vadd.f32 %v466, %v468
        %v470 = vmax.f32 %v469, 0.0
        %s471 = sld [smem:[#allocation10 + $0x8]]
        %v472 = vstv %s471
        %v473 = vmul.f32 %v470, %v472
        %v474 = vadd.f32 %v455, %v473
        %s475 = sld [smem:[#allocation8 + $0x9]]
        %v476 = vstv %s475
        %v477 = vmul.f32 %v299, %v476
        %s478 = sld [smem:[#allocation8 + $0x89]]
        %v479 = vstv %s478
        %v480 = vmul.f32 %v301, %v479
        %v481 = vadd.f32 %v477, %v480
        %s482 = sld [smem:[#allocation8 + $0x109]]
        %v483 = vstv %s482
        %v484 = vmul.f32 %v303, %v483
        %v485 = vadd.f32 %v481, %v484
        %s486 = sld [smem:[#allocation9 + $0x9]]
        %v487 = vstv %s486
        %v488 = vadd.f32 %v485, %v487
        %v489 = vmax.f32 %v488, 0.0
        %s490 = sld [smem:[#allocation10 + $0x9]]
        %v491 = vstv %s490
        %v492 = vmul.f32 %v489, %v491
        %v493 = vadd.f32 %v474, %v492
        %s494 = sld [smem:[#allocation8 + $0xa]]
        %v495 = vstv %s494
        %v496 = vmul.f32 %v299, %v495
        %s497 = sld [smem:[#allocation8 + $0x8a]]
        %v498 = vstv %s497
        %v499 = vmul.f32 %v301, %v498
        %v500 = vadd.f32 %v496, %v499
        %s501 = sld [smem:[#allocation8 + $0x10a]]
        %v502 = vstv %s501
        %v503 = vmul.f32 %v303, %v502
        %v504 = vadd.f32 %v500, %v503
        %s505 = sld [smem:[#allocation9 + $0xa]]
        %v506 = vstv %s505
        %v507 = vadd.f32 %v504, %v506
        %v508 = vmax.f32 %v507, 0.0
        %s509 = sld [smem:[#allocation10 + $0xa]]
        %v510 = vstv %s509
        %v511 = vmul.f32 %v508, %v510
        %v512 = vadd.f32 %v493, %v511
        %s513 = sld [smem:[#allocation8 + $0xb]]
        %v514 = vstv %s513
        %v515 = vmul.f32 %v299, %v514
        %s516 = sld [smem:[#allocation8 + $0x8b]]
        %v517 = vstv %s516
        %v518 = vmul.f32 %v301, %v517
        %v519 = vadd.f32 %v515, %v518
        %s520 = sld [smem:[#allocation8 + $0x10b]]
        %v521 = vstv %s520
        %v522 = vmul.f32 %v303, %v521
        %v523 = vadd.f32 %v519, %v522
        %s524 = sld [smem:[#allocation9 + $0xb]]
        %v525 = vstv %s524
        %v526 = vadd.f32 %v523, %v525
        %v527 = vmax.f32 %v526, 0.0
        %s528 = sld [smem:[#allocation10 + $0xb]]
        %v529 = vstv %s528
        %v530 = vmul.f32 %v527, %v529
        %v531 = vadd.f32 %v512, %v530
        %s532 = sld [smem:[#allocation8 + $0xc]]
        %v533 = vstv %s532
        %v534 = vmul.f32 %v299, %v533
        %s535 = sld [smem:[#allocation8 + $0x8c]]
        %v536 = vstv %s535
        %v537 = vmul.f32 %v301, %v536
        %v538 = vadd.f32 %v534, %v537
        %s539 = sld [smem:[#allocation8 + $0x10c]]
        %v540 = vstv %s539
        %v541 = vmul.f32 %v303, %v540
        %v542 = vadd.f32 %v538, %v541
        %s543 = sld [smem:[#allocation9 + $0xc]]
        %v544 = vstv %s543
        %v545 = vadd.f32 %v542, %v544
        %v546 = vmax.f32 %v545, 0.0
        %s547 = sld [smem:[#allocation10 + $0xc]]
        %v548 = vstv %s547
        %v549 = vmul.f32 %v546, %v548
        %v550 = vadd.f32 %v531, %v549
        %s551 = sld [smem:[#allocation8 + $0xd]]
        %v552 = vstv %s551
        %v553 = vmul.f32 %v299, %v552
        %s554 = sld [smem:[#allocation8 + $0x8d]]
        %v555 = vstv %s554
        %v556 = vmul.f32 %v301, %v555
        %v557 = vadd.f32 %v553, %v556
        %s558 = sld [smem:[#allocation8 + $0x10d]]
        %v559 = vstv %s558
        %v560 = vmul.f32 %v303, %v559
        %v561 = vadd.f32 %v557, %v560
        %s562 = sld [smem:[#allocation9 + $0xd]]
        %v563 = vstv %s562
        %v564 = vadd.f32 %v561, %v563
        %v565 = vmax.f32 %v564, 0.0
        %s566 = sld [smem:[#allocation10 + $0xd]]
        %v567 = vstv %s566
        %v568 = vmul.f32 %v565, %v567
        %v569 = vadd.f32 %v550, %v568
        %s570 = sld [smem:[#allocation8 + $0xe]]
        %v571 = vstv %s570
        %v572 = vmul.f32 %v299, %v571
        %s573 = sld [smem:[#allocation8 + $0x8e]]
        %v574 = vstv %s573
        %v575 = vmul.f32 %v301, %v574
        %v576 = vadd.f32 %v572, %v575
        %s577 = sld [smem:[#allocation8 + $0x10e]]
        %v578 = vstv %s577
        %v579 = vmul.f32 %v303, %v578
        %v580 = vadd.f32 %v576, %v579
        %s581 = sld [smem:[#allocation9 + $0xe]]
        %v582 = vstv %s581
        %v583 = vadd.f32 %v580, %v582
        %v584 = vmax.f32 %v583, 0.0
        %s585 = sld [smem:[#allocation10 + $0xe]]
        %v586 = vstv %s585
        %v587 = vmul.f32 %v584, %v586
        %v588 = vadd.f32 %v569, %v587
        %s589 = sld [smem:[#allocation8 + $0xf]]
        %v590 = vstv %s589
        %v591 = vmul.f32 %v299, %v590
        %s592 = sld [smem:[#allocation8 + $0x8f]]
        %v593 = vstv %s592
        %v594 = vmul.f32 %v301, %v593
        %v595 = vadd.f32 %v591, %v594
        %s596 = sld [smem:[#allocation8 + $0x10f]]
        %v597 = vstv %s596
        %v598 = vmul.f32 %v303, %v597
        %v599 = vadd.f32 %v595, %v598
        %s600 = sld [smem:[#allocation9 + $0xf]]
        %v601 = vstv %s600
        %v602 = vadd.f32 %v599, %v601
        %v603 = vmax.f32 %v602, 0.0
        %s604 = sld [smem:[#allocation10 + $0xf]]
        %v605 = vstv %s604
        %v606 = vmul.f32 %v603, %v605
        %v607 = vadd.f32 %v588, %v606
        %s608 = sld [smem:[#allocation2]]
        %v609 = vstv %s608
        %v610 = vadd.f32 %v607, %v609
        %v611 = vtanh.pop %v610
        %612 = vst [vmem:[%s298] sm:$0x3] %v611
        %s613 = sand.u32 %s160, 1
        %s614 = scalar_lea.sflag [#allocation5], %s613
        %s615 = sand.u32 %s160, 1
        %s616 = smul.addr %s615, 2
        %s617 = scalar_lea.vmem [#allocation12], %s616
        // Predicated region
        $region57: #{tpu_custom_call.1} parent=39 // pred_check
          %p618 = pneg %p170
        $region58: #{tpu_custom_call.1} parent=39 // pred_check_branch
          %620 = sbr.rel (%p618) target = $region60
        $region59: #{tpu_custom_call.1} parent=39 // pred_region
          %s622 = ssub.s32 32, 32
          %623 = vsyncadd %s614, %s622
          %s624 = sadd.s32 %s31, %s30
          %s625 = smul.addr %s624, 32
          %s626 = scalar_lea.hbm %s5, %s625
          %s628 = sshll.u32 %s617, 4
          %s629 = int_to_ptr.vmem [resolvable:$true] %s628
          %631 = dma.vmem_to_hbm [thread:$0]  %s629, 32, %s626, %s614
        $region60: #{tpu_custom_call.1} parent=39 // pred_fallthru
          _
      $region40: #{tpu_custom_call.1} parent=5 // pred_fallthru
        _
      %p632 = scmp.le.s32.totalorder 2, %s21
      // Predicated region
      $region61: #{tpu_custom_call.1} parent=5 // pred_check
        %p633 = pneg %p632
      $region62: #{tpu_custom_call.1} parent=5 // pred_check_branch
        %635 = sbr.rel (%p633) target = $region64
      $region63: #{tpu_custom_call.1} parent=5 // pred_region
        %s636 = ssub.s32 %s21, 2
        // Predicated region
        $region65: #{tpu_custom_call.1} parent=63 // pred_check
          %p637 = pneg %p176
        $region66: #{tpu_custom_call.1} parent=63 // pred_check_branch
          %639 = sbr.rel (%p637) target = $region68
        $region67: #{tpu_custom_call.1} parent=63 // pred_region
          %s640 = sand.u32 %s161, 1
          %s641 = scalar_lea.sflag [#allocation5], %s640
          %s642 = sand.u32 %s161, 1
          %s643 = smul.addr %s642, 2
          %s644 = scalar_lea.vmem [#allocation12], %s643
          %645 = dma.done %s641, 32
        $region68: #{tpu_custom_call.1} parent=63 // pred_fallthru
          _
      $region64: #{tpu_custom_call.1} parent=5 // pred_fallthru
        _
    $region6: #{tpu_custom_call.1} parent=1 // loop_footer
      %s25 = sadd.s32 1, %s21
    $region7: #{tpu_custom_call.1} parent=1 // loop_footer_branch
      %20 = sbr.rel target = $region3
    $region8: #{tpu_custom_call.1} parent=1 // loop_exit
      _
    %646 = vsyncpa [#allocation4], 1
    %s647 = scalar_lea.sflag [#allocation4], 1
    %648 = vsyncpa %s647, 1
    %649 = vsyncpa [#allocation5], 1
    %s650 = scalar_lea.sflag [#allocation5], 1
    %651 = vsyncpa %s650, 1
    %652 = vsyncpa [#allocation6], 1
    %s653 = scalar_lea.sflag [#allocation6], 1
    %654 = vsyncpa %s653, 1
    %655 = vsyncpa [#allocation7], 1
    %s656 = scalar_lea.sflag [#allocation7], 1
    %657 = vsyncpa %s656, 1
    %658 = vsyncpa [#allocation11], 1

</llo_original>
